<compile_context>
chip_gen: v6e
topology: v6e:2x2x1
jax: 0.10.0
libtpu: 0.0.40
codegen_flags: <defaults>
</compile_context>

<pallas_src>
import functools

import jax
import jax.numpy as jnp
from jax.experimental import pallas as pl
from jax.experimental.pallas import tpu as pltpu

_LANE = 128
_SUBLANE = 8


def _round_up(x, m):
    return ((x + m - 1) // m) * m


def _vmem_capacity_bytes():
    try:
        info = pltpu.get_tpu_info()
        cap = int(getattr(info, "vmem_capacity_bytes", 0))
        if cap > 0:
            return cap
    except Exception:
        pass
    return 64 * 1024 * 1024  # conservative default (v7x has the smallest VMEM)


def _softplus(x):
    # Numerically safe softplus (linear above 20, like torch.nn.functional.softplus).
    return jnp.where(x > 20.0, x, jnp.log1p(jnp.exp(jnp.minimum(x, 20.0))))


def _apply_activation(lam, activation, power, scale, threshold, affine_a, affine_b):
    """lam: (tb, D) eigenvalues. scale/threshold/affine_* may be traced scalars."""
    if activation == 'ReEig':
        lam = jnp.maximum(lam, 0.0)
    elif activation == 'PowerEig':
        lam = jnp.sign(lam) * jnp.abs(lam) ** power
    elif activation == 'SqrtEig':
        lam = jnp.sign(lam) * jnp.sqrt(jnp.maximum(jnp.abs(lam), 1e-6))
    elif activation == 'ExpEig':
        lam = jnp.exp(lam)
    elif activation == 'LogEig':
        lam = jnp.log(jnp.maximum(lam, 1e-6))
    elif activation == 'LearnableScale':
        lam = lam * scale
    elif activation == 'ThresholdSoftplus':
        lam = _softplus(lam - threshold)
    elif activation == 'SpectralNormScale':
        norm = jnp.sqrt(jnp.sum(lam * lam, axis=-1, keepdims=True)) + 1e-6
        lam = lam / norm * scale
    elif activation == 'Affine':
        lam = lam * affine_a + affine_b
    else:
        raise ValueError(f'Unknown activation type: {activation}')
    # Final positivity clamp (matches the PyTorch module).
    lam = jnp.where(lam <= 0.0, _softplus(lam) + 1e-4, lam)
    return lam


def _eigen_act_kernel(params_ref, eigvals_ref, eigvecs_ref, out_ref, *,
                      activation, power, dim, flat, bf16_matmul):
    # Learnable scalars live in SMEM (cheap scalar loads, no recompile per value).
    scale = params_ref[0]
    threshold = params_ref[1]
    affine_a = params_ref[2]
    affine_b = params_ref[3]

    lam = _apply_activation(eigvals_ref[...], activation, power,
                            scale, threshold, affine_a, affine_b)      # (tb, D)

    V = eigvecs_ref[...]
    tb = V.shape[0]
    if flat:
        V = V.reshape(tb, dim, dim)                                    # lane-dense load -> 3D view
    W = V * lam[:, None, :]                                            # V @ diag(f(lam))

    if bf16_matmul:
        W = W.astype(jnp.bfloat16)
        V = V.astype(jnp.bfloat16)

    # V diag(lam) V^T == W contracted with V on the column index (last dim of
    # both), so the MXU consumes V as-is (no explicit transpose; confirm with
    # pl.lower_as_mlir that no per-matrix vxpose is emitted).
    # TODO(synk): for D << 128 this is `tb` tiny under-occupied MXU matmuls; a
    # lane-packed block-diagonal / pure-VPU formulation would cut MXU issues by
    # ~128/D but is not cleanly expressible with current jnp ops.
    out = jnp.einsum('bij,bkj->bik', W, V, preferred_element_type=jnp.float32)
    if flat:
        out = out.reshape(tb, dim * dim)                               # lane-dense store
    out_ref[...] = out.astype(out_ref.dtype)


def _choose_block_rows(B, D, flat, max_rows=None):
    """Rows (matrices) per block and number of grid steps, padding-aware."""
    if flat:
        vec_row = _round_up(D * D, _LANE) * 4        # one sublane-row per matrix
    else:
        vec_row = D * _round_up(D, _LANE) * 4        # D sublane-rows, lane-padded
    val_row = _round_up(D, _LANE) * 4
    # eigvecs in + out + eigvals, each double-buffered by the Pallas pipeline.
    per_matrix = 2 * (2 * vec_row + val_row)

    vmem_cap = _vmem_capacity_bytes()
    tb_vmem = max(1, int(0.40 * vmem_cap) // per_matrix)
    tb_block = max(1, (4 * 1024 * 1024) // vec_row)  # ~4 MiB eigvec block target
    tb = min(tb_vmem, tb_block, 1024, B)             # 1024: bound per-step matmul count
    if max_rows is not None:
        tb = min(tb, max_rows)
    tb = max(tb, 1)

    min_blocks = 2 if B >= 16 else 1                 # v7x: 2 TCs on the parallel axis
    num_blocks = max(pl.cdiv(B, tb), min_blocks)
    if num_blocks == 1:
        return B, 1                                  # single block: tb == B, no padding
    tb = _round_up(pl.cdiv(B, num_blocks), _SUBLANE) # balanced blocks
    num_blocks = pl.cdiv(B, tb)
    return tb, num_blocks


def eigen_activation(X=None, eigvals=None, eigvecs=None, *,
                     activation='ReEig', power=0.5, scale=1.0, threshold=1.0,
                     affine_a=1.0, affine_b=0.0, bf16_matmul=False,
                     max_rows_per_block=None):
    """Pallas implementation of EigenActivation.forward."""
    if eigvals is None or eigvecs is None:
        # TODO(synk): symmetric eigendecomposition has no Pallas TPU primitive;
        # it stays in plain JAX (mirrors torch.linalg.eigh before the hot path).
        eigvals, eigvecs = jnp.linalg.eigh(X)

    eigvals = jnp.asarray(eigvals, jnp.float32)
    eigvecs = jnp.asarray(eigvecs, jnp.float32)
    B, D = eigvals.shape
    DD = D * D

    # Learnable scalars -> SMEM (works with Python floats or traced arrays).
    params = jnp.stack([jnp.asarray(v, jnp.float32).reshape(())
                        for v in (scale, threshold, affine_a, affine_b)])

    vmem_cap = _vmem_capacity_bytes()

    def _run(flat):
        tb, num_blocks = _choose_block_rows(B, D, flat, max_rows_per_block)
        B_pad = num_blocks * tb

        vecs_io = eigvecs.reshape(B, DD) if flat else eigvecs  # free row-major reshape
        vals_io = eigvals                                       # (B, D)
        if B_pad != B:
            # Rare ragged remainder only (blocks are balanced). Zero rows give
            # zero output matrices and are sliced off below.
            pad = B_pad - B
            vecs_io = jnp.pad(vecs_io, ((0, pad),) + ((0, 0),) * (vecs_io.ndim - 1))
            vals_io = jnp.pad(vals_io, ((0, pad), (0, 0)))

        if flat:
            vec_block, vec_map = (tb, DD), (lambda b: (b, 0))
            out_struct = jax.ShapeDtypeStruct((B_pad, DD), jnp.float32)
            vec_row_bytes = _round_up(DD, _LANE) * 4
        else:
            vec_block, vec_map = (tb, D, D), (lambda b: (b, 0, 0))
            out_struct = jax.ShapeDtypeStruct((B_pad, D, D), jnp.float32)
            vec_row_bytes = D * _round_up(D, _LANE) * 4

        ws = tb * 2 * (2 * vec_row_bytes + _round_up(D, _LANE) * 4)
        vmem_limit = int(min(0.85 * vmem_cap, max(32 * 1024 * 1024, 2 * ws)))

        kernel = functools.partial(
            _eigen_act_kernel, activation=activation, power=float(power),
            dim=D, flat=flat, bf16_matmul=bf16_matmul)

        cost = pl.CostEstimate(
            flops=2 * B_pad * D * D * D,
            transcendentals=2 * B_pad * D,
            bytes_accessed=(2 * B_pad * DD + B_pad * D + 4) * 4)

        out = pl.pallas_call(
            kernel,
            out_shape=out_struct,
            grid=(num_blocks,),
            in_specs=[
                pl.BlockSpec(memory_space=pltpu.MemorySpace.SMEM),  # params (4,)
                pl.BlockSpec((tb, D), lambda b: (b, 0)),            # eigvals
                pl.BlockSpec(vec_block, vec_map),                   # eigvecs
            ],
            out_specs=pl.BlockSpec(vec_block, vec_map),
            compiler_params=pltpu.CompilerParams(
                dimension_semantics=("parallel",),
                vmem_limit_bytes=vmem_limit),
            cost_estimate=cost,
        )(params, vals_io, vecs_io)

        if B_pad != B:
            out = out[:B]
        if flat:
            out = out.reshape(B, D, D)
        return out

    use_flat = (D % _LANE != 0)  # lane-dense flattened (B, D*D) slabs for small D
    if not use_flat:
        return _run(flat=False)
    try:
        return _run(flat=True)
    except Exception:
        # Robust fallback: if this Mosaic build rejects the in-kernel
        # (tb, D*D) <-> (tb, D, D) relayout, the 3-D block path is always legal.
        return _run(flat=False)


def _torch_style_reference(X, activation, power=0.5, scale=1.0, threshold=1.0,
                           affine_a=1.0, affine_b=0.0):
    """Independent pure-JAX mirror of the PyTorch module (not shared with the kernel)."""
    lam, V = jnp.linalg.eigh(X)
    if activation == 'ReEig':
        lam = jax.nn.relu(lam)
    elif activation == 'PowerEig':
        lam = jnp.sign(lam) * jnp.abs(lam) ** power
    elif activation == 'SqrtEig':
        lam = jnp.sign(lam) * jnp.sqrt(jnp.maximum(jnp.abs(lam), 1e-6))
    elif activation == 'ExpEig':
        lam = jnp.exp(lam)
    elif activation == 'LogEig':
        lam = jnp.log(jnp.maximum(lam, 1e-6))
    elif activation == 'LearnableScale':
        lam = lam * scale
    elif activation == 'ThresholdSoftplus':
        lam = jax.nn.softplus(lam - threshold)
    elif activation == 'SpectralNormScale':
        norm = jnp.linalg.norm(lam, ord=2, axis=-1, keepdims=True) + 1e-6
        lam = lam / norm * scale
    elif activation == 'Affine':
        lam = lam * affine_a + affine_b
    else:
        raise ValueError(activation)
    lam = jnp.where(lam <= 0, jax.nn.softplus(lam) + 1e-4, lam)
    # eigvecs @ diag_embed(lam) @ eigvecs.transpose(-1, -2)
    return jnp.einsum('bij,bj,bkj->bik', V, lam, V)


if __name__ == "__main__":
    key = jax.random.PRNGKey(0)
    B, D = 2, 16
    A = jax.random.normal(key, (B, D, D), dtype=jnp.float32)
    # SPD input: A A^T + eps I
    X = jnp.einsum('bij,bkj->bik', A, A) + 1e-3 * jnp.eye(D, dtype=jnp.float32)

    ok = True
    for act in ['ReEig', 'PowerEig', 'SqrtEig', 'ExpEig', 'LogEig',
                'LearnableScale', 'ThresholdSoftplus', 'SpectralNormScale',
                'Affine']:
        out = eigen_activation(X, activation=act, power=0.5, scale=1.0,
                               threshold=1.0, affine_a=1.0, affine_b=0.0)
        out = jax.block_until_ready(out)
        ref = _torch_style_reference(X, act, power=0.5)
        if not jnp.allclose(out, ref, atol=1e-3, rtol=1e-3):
            ok = False
            print(f"MISMATCH for activation {act}")

    # Multi-block + ragged-remainder path (2 grid steps, small tail padding).
    key2 = jax.random.PRNGKey(0)
    B2 = 20
    A2 = jax.random.normal(key2, (B2, D, D), dtype=jnp.float32)
    X2 = jnp.einsum('bij,bkj->bik', A2, A2) + 1e-3 * jnp.eye(D, dtype=jnp.float32)
    out2 = jax.block_until_ready(
        eigen_activation(X2, activation='SqrtEig', max_rows_per_block=16))
    ref2 = _torch_style_reference(X2, 'SqrtEig')
    if not jnp.allclose(out2, ref2, atol=1e-3, rtol=1e-3):
        ok = False
        print("MISMATCH for multi-block SqrtEig")

    if ok:
        print("KERNEL_OK")
</pallas_src>

<mosaic_0001>
module attributes {stable_mosaic.version = 11 : i64} {
  func.func @_eigen_act_kernel(%arg0: i32, %arg1: memref<4xf32, #tpu.memory_space<smem>>, %arg2: memref<2x16xf32, #tpu.memory_space<vmem>>, %arg3: memref<2x256xf32, #tpu.memory_space<vmem>>, %arg4: memref<2x256xf32, #tpu.memory_space<vmem>>) attributes {dimension_semantics = [#tpu.dimension_semantics<parallel>], iteration_bounds = array<i64: 1>, scalar_prefetch = 0 : i64, scratch_operands = 0 : i64, tpu.core_type = #tpu.core_type<tc>, window_params = [{transform_indices = @transform_0, window_bounds = array<i64: 4>}, {transform_indices = @transform_1, window_bounds = array<i64: 2, 16>}, {transform_indices = @transform_2, window_bounds = array<i64: 2, 256>}, {transform_indices = @transform_3, window_bounds = array<i64: 2, 256>}]} {
    %c0 = arith.constant 0 : index
    %c0_0 = arith.constant 0 : index
    %0 = vector.load %arg2[%c0, %c0_0] : memref<2x16xf32, #tpu.memory_space<vmem>>, vector<2x16xf32>
    %cst = arith.constant 0.000000e+00 : f32
    %1 = vector.broadcast %cst : f32 to vector<2x16xf32>
    %2 = arith.maximumf %0, %1 : vector<2x16xf32>
    %cst_1 = arith.constant 0.000000e+00 : f32
    %3 = vector.broadcast %cst_1 : f32 to vector<2x16xf32>
    %4 = arith.cmpf ole, %2, %3 : vector<2x16xf32>
    %cst_2 = arith.constant 2.000000e+01 : f32
    %5 = vector.broadcast %cst_2 : f32 to vector<2x16xf32>
    %6 = arith.cmpf ogt, %2, %5 : vector<2x16xf32>
    %cst_3 = arith.constant 2.000000e+01 : f32
    %7 = vector.broadcast %cst_3 : f32 to vector<2x16xf32>
    %8 = arith.minimumf %2, %7 : vector<2x16xf32>
    %9 = math.exp %8 : vector<2x16xf32>
    %10 = math.log1p %9 : vector<2x16xf32>
    %11 = arith.select %6, %2, %10 : vector<2x16xi1>, vector<2x16xf32>
    %cst_4 = arith.constant 9.99999974E-5 : f32
    %12 = vector.broadcast %cst_4 : f32 to vector<2x16xf32>
    %13 = arith.addf %11, %12 : vector<2x16xf32>
    %14 = arith.select %4, %13, %2 : vector<2x16xi1>, vector<2x16xf32>
    %c0_5 = arith.constant 0 : index
    %c0_6 = arith.constant 0 : index
    %15 = vector.load %arg3[%c0_5, %c0_6] : memref<2x256xf32, #tpu.memory_space<vmem>>, vector<2x256xf32>
    %16 = vector.shape_cast %15 : vector<2x256xf32> to vector<2x16x16xf32>
    %17 = vector.shape_cast %14 : vector<2x16xf32> to vector<2x1x16xf32>
    %18 = vector.broadcast %17 : vector<2x1x16xf32> to vector<2x16x16xf32>
    %19 = arith.mulf %16, %18 : vector<2x16x16xf32>
    "tpu.trace_start"() <{level = 10 : i32, message = "bij,bkj->bik"}> : () -> ()
    %cst_7 = arith.constant dense<0.000000e+00> : vector<2x16x16xf32>
    %20 = tpu.matmul %19, %16, %cst_7 {dimension_numbers = #tpu.dot_dimension_numbers<[2], [2], [1], [1], [0, 0, 0, 1, 1, 1], [0], [0]>} : vector<2x16x16xf32>, vector<2x16x16xf32>, vector<2x16x16xf32> -> vector<2x16x16xf32>
    "tpu.trace_stop"() : () -> ()
    %21 = vector.shape_cast %20 : vector<2x16x16xf32> to vector<2x256xf32>
    %c0_8 = arith.constant 0 : index
    %c0_9 = arith.constant 0 : index
    %22 = vector.load %arg4[%c0_8, %c0_9] : memref<2x256xf32, #tpu.memory_space<vmem>>, vector<2x256xf32>
    tpu.vector_store %arg4[%c0_8, %c0_9], %21 {strides = array<i32>} : memref<2x256xf32, #tpu.memory_space<vmem>>, vector<2x256xf32>,
    return
  }
  func.func @transform_0(%arg0: i32) -> i32 {
    %c0_i32 = arith.constant 0 : i32
    %c0_i32_0 = arith.constant 0 : i32
    return %c0_i32 : i32
  }
  func.func @transform_1(%arg0: i32) -> (i32, i32) {
    %c0_i32 = arith.constant 0 : i32
    %c0_i32_0 = arith.constant 0 : i32
    return %arg0, %c0_i32 : i32, i32
  }
  func.func @transform_2(%arg0: i32) -> (i32, i32) {
    %c0_i32 = arith.constant 0 : i32
    %c0_i32_0 = arith.constant 0 : i32
    return %arg0, %c0_i32 : i32, i32
  }
  func.func @transform_3(%arg0: i32) -> (i32, i32) {
    %c0_i32 = arith.constant 0 : i32
    %c0_i32_0 = arith.constant 0 : i32
    return %arg0, %c0_i32 : i32, i32
  }
}

module attributes {stable_mosaic.version = 11 : i64} {
  func.func @_eigen_act_kernel(%arg0: i32, %arg1: memref<4xf32, #tpu.memory_space<smem>>, %arg2: memref<2x16xf32, #tpu.memory_space<vmem>>, %arg3: memref<2x16x16xf32, #tpu.memory_space<vmem>>, %arg4: memref<2x16x16xf32, #tpu.memory_space<vmem>>) attributes {dimension_semantics = [#tpu.dimension_semantics<parallel>], iteration_bounds = array<i64: 1>, scalar_prefetch = 0 : i64, scratch_operands = 0 : i64, tpu.core_type = #tpu.core_type<tc>, window_params = [{transform_indices = @transform_0, window_bounds = array<i64: 4>}, {transform_indices = @transform_1, window_bounds = array<i64: 2, 16>}, {transform_indices = @transform_2, window_bounds = array<i64: 2, 16, 16>}, {transform_indices = @transform_3, window_bounds = array<i64: 2, 16, 16>}]} {
    %c0 = arith.constant 0 : index
    %c0_0 = arith.constant 0 : index
    %0 = vector.load %arg2[%c0, %c0_0] : memref<2x16xf32, #tpu.memory_space<vmem>>, vector<2x16xf32>
    %cst = arith.constant 0.000000e+00 : f32
    %1 = vector.broadcast %cst : f32 to vector<2x16xf32>
    %2 = arith.maximumf %0, %1 : vector<2x16xf32>
    %cst_1 = arith.constant 0.000000e+00 : f32
    %3 = vector.broadcast %cst_1 : f32 to vector<2x16xf32>
    %4 = arith.cmpf ole, %2, %3 : vector<2x16xf32>
    %cst_2 = arith.constant 2.000000e+01 : f32
    %5 = vector.broadcast %cst_2 : f32 to vector<2x16xf32>
    %6 = arith.cmpf ogt, %2, %5 : vector<2x16xf32>
    %cst_3 = arith.constant 2.000000e+01 : f32
    %7 = vector.broadcast %cst_3 : f32 to vector<2x16xf32>
    %8 = arith.minimumf %2, %7 : vector<2x16xf32>
    %9 = math.exp %8 : vector<2x16xf32>
    %10 = math.log1p %9 : vector<2x16xf32>
    %11 = arith.select %6, %2, %10 : vector<2x16xi1>, vector<2x16xf32>
    %cst_4 = arith.constant 9.99999974E-5 : f32
    %12 = vector.broadcast %cst_4 : f32 to vector<2x16xf32>
    %13 = arith.addf %11, %12 : vector<2x16xf32>
    %14 = arith.select %4, %13, %2 : vector<2x16xi1>, vector<2x16xf32>
    %c0_5 = arith.constant 0 : index
    %c0_6 = arith.constant 0 : index
    %c0_7 = arith.constant 0 : index
    %15 = vector.load %arg3[%c0_5, %c0_6, %c0_7] : memref<2x16x16xf32, #tpu.memory_space<vmem>>, vector<2x16x16xf32>
    %16 = vector.shape_cast %14 : vector<2x16xf32> to vector<2x1x16xf32>
    %17 = vector.broadcast %16 : vector<2x1x16xf32> to vector<2x16x16xf32>
    %18 = arith.mulf %15, %17 : vector<2x16x16xf32>
    "tpu.trace_start"() <{level = 10 : i32, message = "bij,bkj->bik"}> : () -> ()
    %cst_8 = arith.constant dense<0.000000e+00> : vector<2x16x16xf32>
    %19 = tpu.matmul %18, %15, %cst_8 {dimension_numbers = #tpu.dot_dimension_numbers<[2], [2], [1], [1], [0, 0, 0, 1, 1, 1], [0], [0]>} : vector<2x16x16xf32>, vector<2x16x16xf32>, vector<2x16x16xf32> -> vector<2x16x16xf32>
    "tpu.trace_stop"() : () -> ()
    %c0_9 = arith.constant 0 : index
    %c0_10 = arith.constant 0 : index
    %c0_11 = arith.constant 0 : index
    %20 = vector.load %arg4[%c0_9, %c0_10, %c0_11] : memref<2x16x16xf32, #tpu.memory_space<vmem>>, vector<2x16x16xf32>
    tpu.vector_store %arg4[%c0_9, %c0_10, %c0_11], %19 {strides = array<i32>} : memref<2x16x16xf32, #tpu.memory_space<vmem>>, vector<2x16x16xf32>,
    return
  }
  func.func @transform_0(%arg0: i32) -> i32 {
    %c0_i32 = arith.constant 0 : i32
    %c0_i32_0 = arith.constant 0 : i32
    return %c0_i32 : i32
  }
  func.func @transform_1(%arg0: i32) -> (i32, i32) {
    %c0_i32 = arith.constant 0 : i32
    %c0_i32_0 = arith.constant 0 : i32
    return %arg0, %c0_i32 : i32, i32
  }
  func.func @transform_2(%arg0: i32) -> (i32, i32, i32) {
    %c0_i32 = arith.constant 0 : i32
    %c0_i32_0 = arith.constant 0 : i32
    %c0_i32_1 = arith.constant 0 : i32
    return %arg0, %c0_i32, %c0_i32_0 : i32, i32, i32
  }
  func.func @transform_3(%arg0: i32) -> (i32, i32, i32) {
    %c0_i32 = arith.constant 0 : i32
    %c0_i32_0 = arith.constant 0 : i32
    %c0_i32_1 = arith.constant 0 : i32
    return %arg0, %c0_i32, %c0_i32_0 : i32, i32, i32
  }
}

</mosaic_0001>

<llo_original>
// kernel: tpu_custom_call.1
$region0: #{tpu_custom_call.1}
  #allocation0 [shape = 'u32[]', space=smem, size = 0x4, offset = 0x4, fixed_abs, tag = 'smem constant byte address 0x4 - core index']
  #allocation1 [shape = 'u32[144,128]{1,0:T(1,128)}', space=vmem, size = 0x12000, scoped, tag = 'internal scratch']
  %s0 = inlined_call_operand.hbm [shape: f32[4], index: 0, kind: input, shape index: {}]
  %s1 = inlined_call_operand.hbm [shape: f32[2,16], index: 1, kind: input, shape index: {}]
  %s2 = inlined_call_operand.hbm [shape: f32[2,256], index: 2, kind: input, shape index: {}]
  %s3 = inlined_call_operand.hbm [shape: f32[2,256], index: 3, kind: output, shape index: {}]
  %s4 = sld [smem:[#allocation0]]
  $region34: #{tpu_custom_call.1} parent=0
    _
  %s6 = ssub.s32 1, %s4
  %s7 = scalar_select 0, %s6, %s4
  $region1: #{tpu_custom_call.1} parent=0
    #allocation2 [shape = 'u8[512]{0}', space=smem, size = 0x200, scoped, tag = 'input window, operand 0, single buffered']
    #allocation3 [shape = 's32[1]{0}', space=sflag, size = 0x4, scoped, tag = 'scoped memory for tpu_custom_call.1']
    #allocation4 [shape = 's32[1]{0}', space=sflag, size = 0x4, scoped, tag = 'scoped memory for tpu_custom_call.1']
    #allocation5 [shape = 's32[1]{0}', space=sflag, size = 0x4, scoped, tag = 'scoped memory for tpu_custom_call.1']
    #allocation6 [shape = 'u8[1024]{0}', space=vmem, size = 0x400, scoped, tag = 'input window, operand 1, single buffered']
    #allocation7 [shape = 'u8[2048]{0}', space=vmem, size = 0x800, scoped, tag = 'input window, operand 2, single buffered']
    #allocation8 [shape = 's32[1]{0}', space=sflag, size = 0x4, scoped, tag = 'scoped memory for tpu_custom_call.1']
    #allocation9 [shape = 'u8[2048]{0}', space=vmem, size = 0x800, scoped, tag = 'output window, operand 0, single buffered']
    %8 = vsyncpa [#allocation5], 0
    %9 = vsyncpa [#allocation3], 0
    %10 = vsyncpa [#allocation8], 0
    %11 = vsyncpa [#allocation4], 0
    // Predicated region
    $region2: #{tpu_custom_call.1} parent=1 // pred_check
      _
    $region3: #{tpu_custom_call.1} parent=1 // pred_check_branch
      %13 = sbr.rel (0) target = $region5
    $region4: #{tpu_custom_call.1} parent=1 // pred_region
      %s15 = ssub.s32 16, 16
      %16 = vsyncadd [#allocation5], %s15
      %19 = dma.hbm_to_smem %s0, 16, [#allocation2], [#allocation5]
    $region5: #{tpu_custom_call.1} parent=1 // pred_fallthru
      _
    // Predicated region
    $region6: #{tpu_custom_call.1} parent=1 // pred_check
      _
    $region7: #{tpu_custom_call.1} parent=1 // pred_check_branch
      %21 = sbr.rel (0) target = $region9
    $region8: #{tpu_custom_call.1} parent=1 // pred_region
      %s23 = ssub.s32 32, 32
      %24 = vsyncadd [#allocation3], %s23
      %s26 = sshll.u32 [#allocation6], 4
      %s27 = int_to_ptr.vmem [resolvable:$true] %s26
      %29 = dma.hbm_to_vmem [thread:$0]  %s1, 32, %s27, [#allocation3]
    $region9: #{tpu_custom_call.1} parent=1 // pred_fallthru
      _
    // Predicated region
    $region10: #{tpu_custom_call.1} parent=1 // pred_check
      _
    $region11: #{tpu_custom_call.1} parent=1 // pred_check_branch
      %31 = sbr.rel (0) target = $region13
    $region12: #{tpu_custom_call.1} parent=1 // pred_region
      %s33 = ssub.s32 64, 64
      %34 = vsyncadd [#allocation8], %s33
      %s36 = sshll.u32 [#allocation7], 4
      %s37 = int_to_ptr.vmem [resolvable:$true] %s36
      %39 = dma.hbm_to_vmem [thread:$0]  %s2, 64, %s37, [#allocation8]
    $region13: #{tpu_custom_call.1} parent=1 // pred_fallthru
      _
    // Predicated region
    $region14: #{tpu_custom_call.1} parent=1 // pred_check
      _
    $region15: #{tpu_custom_call.1} parent=1 // pred_check_branch
      %41 = sbr.rel (0) target = $region17
    $region16: #{tpu_custom_call.1} parent=1 // pred_region
      %42 = dma.done [#allocation5], 16
    $region17: #{tpu_custom_call.1} parent=1 // pred_fallthru
      _
    // Predicated region
    $region18: #{tpu_custom_call.1} parent=1 // pred_check
      _
    $region19: #{tpu_custom_call.1} parent=1 // pred_check_branch
      %44 = sbr.rel (0) target = $region21
    $region20: #{tpu_custom_call.1} parent=1 // pred_region
      %45 = dma.done [#allocation3], 32
    $region21: #{tpu_custom_call.1} parent=1 // pred_fallthru
      _
    // Predicated region
    $region22: #{tpu_custom_call.1} parent=1 // pred_check
      _
    $region23: #{tpu_custom_call.1} parent=1 // pred_check_branch
      %47 = sbr.rel (0) target = $region25
    $region24: #{tpu_custom_call.1} parent=1 // pred_region
      %48 = dma.done [#allocation8], 64
    $region25: #{tpu_custom_call.1} parent=1 // pred_fallthru
      _
    %49 = sfence
    %v50 = vld [vmem:[#allocation6] sm:$0x3]
    %v51 = vmax.f32 %v50, 0.0
    %vm52 = vcmp.le.f32.partialorder %v51, 0.0
    %vm53 = vcmp.gt.f32.partialorder %v51, 20.0
    %v54 = vmin.f32 %v51, 20.0
    %v55 = vmul.f32 %v54, 1.442695
    %v56 = vpow.pop %v55
    %v57 = vadd.f32 %v56, 1.0
    %v58 = vlog2.pop %v57
    %v59 = vmul.f32 %v58, 0.6931472
    %v60 = vmul.f32 -0.5, %v56
    %v61 = vadd.f32 %v60, 1.0
    %v62 = vmul.f32 %v61, %v56
    %v63 = vand.u32 2147483647, %v56
    %vm64 = vcmp.lt.f32.partialorder %v63, 0.0004427343
    %v65 = vsel %vm64, %v62, %v59
    %v66 = vsel %vm53, %v51, %v65
    %v67 = vadd.f32 %v66, 0.0001
    %v68 = vsel %vm52, %v67, %v51
    %v69 = vld [vmem:[#allocation7] sm:$0xf]
    %v71 = vrot.slane %v69, 2
    %73 = vrot.lane.b32.xlu0 %v69, 112
    %v74 = vpop.permute.xlu0 %73
    %v75 = vrot.slane %v74, 2
    %77 = vrot.lane.b32.xlu0 %v69, 96
    %v78 = vpop.permute.xlu0 %77
    %v79 = vrot.slane %v78, 2
    %81 = vrot.lane.b32.xlu0 %v69, 80
    %v82 = vpop.permute.xlu0 %81
    %v83 = vrot.slane %v82, 2
    %85 = vrot.lane.b32.xlu0 %v69, 64
    %v86 = vpop.permute.xlu0 %85
    %v87 = vrot.slane %v86, 2
    %89 = vrot.lane.b32.xlu0 %v69, 48
    %v90 = vpop.permute.xlu0 %89
    %v91 = vrot.slane %v90, 2
    %93 = vrot.lane.b32.xlu0 %v69, 32
    %v94 = vpop.permute.xlu0 %93
    %v95 = vrot.slane %v94, 2
    %97 = vrot.lane.b32.xlu0 %v69, 16
    %v98 = vpop.permute.xlu0 %97
    %v99 = vrot.slane %v98, 2
    %v108 = vcombine.low %v69, %v74
    %v110 = vunpack.c.l.s4 1934713408
    %v111 = vunpack.c.0.s8 %v110
    %v112 = vlaneseq
    %v113 = vshrl.u32 %v112, 7
    %v114 = vsub.s32 %v111, %v113
    %v115 = vrot.slane %v108, %v114
    %v116 = vcombine.high %v115, 0.0
    %v117 = vcombine.low %v78, %v82
    %v119 = vunpack.c.l.s4 1934713408
    %v120 = vunpack.c.0.s8 %v119
    %v121 = vlaneseq
    %v122 = vshrl.u32 %v121, 7
    %v123 = vsub.s32 %v120, %v122
    %v124 = vrot.slane %v117, %v123
    %v125 = vcombine.high %v124, 0.0
    %v126 = vcombine.low %v86, %v90
    %v128 = vunpack.c.l.s4 1934713408
    %v129 = vunpack.c.0.s8 %v128
    %v130 = vlaneseq
    %v131 = vshrl.u32 %v130, 7
    %v132 = vsub.s32 %v129, %v131
    %v133 = vrot.slane %v126, %v132
    %v134 = vcombine.high %v133, 0.0
    %v135 = vcombine.low %v94, %v98
    %v137 = vunpack.c.l.s4 1934713408
    %v138 = vunpack.c.0.s8 %v137
    %v139 = vlaneseq
    %v140 = vshrl.u32 %v139, 7
    %v141 = vsub.s32 %v138, %v140
    %v142 = vrot.slane %v135, %v141
    %v143 = vcombine.high %v142, 0.0
    %v144 = vcombine.low %v71, %v75
    %v146 = vunpack.c.l.s4 1934713408
    %v147 = vunpack.c.0.s8 %v146
    %v148 = vlaneseq
    %v149 = vshrl.u32 %v148, 7
    %v150 = vsub.s32 %v147, %v149
    %v151 = vrot.slane %v144, %v150
    %v152 = vcombine.high %v151, 0.0
    %v153 = vcombine.low %v79, %v83
    %v155 = vunpack.c.l.s4 1934713408
    %v156 = vunpack.c.0.s8 %v155
    %v157 = vlaneseq
    %v158 = vshrl.u32 %v157, 7
    %v159 = vsub.s32 %v156, %v158
    %v160 = vrot.slane %v153, %v159
    %v161 = vcombine.high %v160, 0.0
    %v162 = vcombine.low %v87, %v91
    %v164 = vunpack.c.l.s4 1934713408
    %v165 = vunpack.c.0.s8 %v164
    %v166 = vlaneseq
    %v167 = vshrl.u32 %v166, 7
    %v168 = vsub.s32 %v165, %v167
    %v169 = vrot.slane %v162, %v168
    %v170 = vcombine.high %v169, 0.0
    %v171 = vcombine.low %v95, %v99
    %v173 = vunpack.c.l.s4 1934713408
    %v174 = vunpack.c.0.s8 %v173
    %v175 = vlaneseq
    %v176 = vshrl.u32 %v175, 7
    %v177 = vsub.s32 %v174, %v176
    %v178 = vrot.slane %v171, %v177
    %v179 = vcombine.high %v178, 0.0
    %v182 = vunpack.c.l.s4 1966171168
    %v183 = vunpack.c.0.s8 %v182
    %v184 = vlaneseq
    %v185 = vshrl.u32 %v184, 7
    %v186 = vsub.s32 %v183, %v185
    %v187 = vrot.slane %v68, %v186
    %v188 = vcombine.high %v187, %v187
    %v190 = vunpack.c.l.s4 1966171168
    %v191 = vunpack.c.0.s8 %v190
    %v192 = vlaneseq
    %v193 = vshrl.u32 %v192, 7
    %v194 = vsub.s32 %v191, %v193
    %v195 = vrot.slane %v187, %v194
    %v197 = vunpack.c.l.s4 1966171168
    %v198 = vunpack.c.0.s8 %v197
    %v199 = vlaneseq
    %v200 = vshrl.u32 %v199, 7
    %v201 = vsub.s32 %v198, %v200
    %v202 = vrot.slane %v188, %v201
    %v203 = vlaneseq
    %v204 = vshrl.u32 %v203, 7
    %v205 = vsub.s32 0, %v204
    %v206 = vrot.slane %v195, %v205
    %v207 = vlaneseq
    %v208 = vshrl.u32 %v207, 7
    %v209 = vsub.s32 0, %v208
    %v210 = vrot.slane %v202, %v209
    %v211 = vcombine.high %v206, %v206
    %v213 = vunpack.c.l.s4 1983009808
    %v214 = vunpack.c.0.s8 %v213
    %v215 = vlaneseq
    %v216 = vshrl.u32 %v215, 7
    %v217 = vsub.s32 %v214, %v216
    %v218 = vrot.slane %v206, %v217
    %v220 = vunpack.c.l.s4 1983009808
    %v221 = vunpack.c.0.s8 %v220
    %v222 = vlaneseq
    %v223 = vshrl.u32 %v222, 7
    %v224 = vsub.s32 %v221, %v223
    %v225 = vrot.slane %v211, %v224
    %v226 = vcombine.high %v218, %v218
    %v227 = vcombine.high %v225, %v225
    %v228 = vcombine.high %v210, %v210
    %v230 = vunpack.c.l.s4 1983009808
    %v231 = vunpack.c.0.s8 %v230
    %v232 = vlaneseq
    %v233 = vshrl.u32 %v232, 7
    %v234 = vsub.s32 %v231, %v233
    %v235 = vrot.slane %v210, %v234
    %v237 = vunpack.c.l.s4 1983009808
    %v238 = vunpack.c.0.s8 %v237
    %v239 = vlaneseq
    %v240 = vshrl.u32 %v239, 7
    %v241 = vsub.s32 %v238, %v240
    %v242 = vrot.slane %v228, %v241
    %v243 = vcombine.high %v235, %v235
    %v244 = vcombine.high %v242, %v242
    %v253 = vmul.f32 %v115, %v218
    %v254 = vmul.f32 %v124, %v226
    %v255 = vmul.f32 %v133, %v225
    %v256 = vmul.f32 %v142, %v227
    %v257 = vmul.f32 %v151, %v218
    %v258 = vmul.f32 %v160, %v226
    %v259 = vmul.f32 %v169, %v225
    %v260 = vmul.f32 %v178, %v227
    %v261 = vmul.f32 %v116, %v235
    %v262 = vmul.f32 %v125, %v243
    %v263 = vmul.f32 %v134, %v242
    %v264 = vmul.f32 %v143, %v244
    %v265 = vmul.f32 %v152, %v235
    %v266 = vmul.f32 %v161, %v243
    %v267 = vmul.f32 %v170, %v242
    %v268 = vmul.f32 %v179, %v244
    %v277 = vcombine.low %v253, %v254
    %v278 = vcombine.low %v255, %v256
    %v280 = vunpack.c.l.s4 1983009808
    %v281 = vunpack.c.0.s8 %v280
    %v282 = vlaneseq
    %v283 = vshrl.u32 %v282, 7
    %v284 = vsub.s32 %v281, %v283
    %v285 = vrot.slane %v277, %v284
    %v287 = vunpack.c.l.s4 1983009808
    %v288 = vunpack.c.0.s8 %v287
    %v289 = vlaneseq
    %v290 = vshrl.u32 %v289, 7
    %v291 = vsub.s32 %v288, %v290
    %v292 = vrot.slane %v278, %v291
    %v293 = vcombine.low %v285, %v292
    %v294 = vcombine.low %v257, %v258
    %v295 = vcombine.low %v259, %v260
    %v297 = vunpack.c.l.s4 1983009808
    %v298 = vunpack.c.0.s8 %v297
    %v299 = vlaneseq
    %v300 = vshrl.u32 %v299, 7
    %v301 = vsub.s32 %v298, %v300
    %v302 = vrot.slane %v294, %v301
    %v304 = vunpack.c.l.s4 1983009808
    %v305 = vunpack.c.0.s8 %v304
    %v306 = vlaneseq
    %v307 = vshrl.u32 %v306, 7
    %v308 = vsub.s32 %v305, %v307
    %v309 = vrot.slane %v295, %v308
    %v310 = vcombine.low %v302, %v309
    %v319 = vcombine.low %v115, %v124
    %v320 = vcombine.low %v133, %v142
    %v322 = vunpack.c.l.s4 1983009808
    %v323 = vunpack.c.0.s8 %v322
    %v324 = vlaneseq
    %v325 = vshrl.u32 %v324, 7
    %v326 = vsub.s32 %v323, %v325
    %v327 = vrot.slane %v319, %v326
    %v329 = vunpack.c.l.s4 1983009808
    %v330 = vunpack.c.0.s8 %v329
    %v331 = vlaneseq
    %v332 = vshrl.u32 %v331, 7
    %v333 = vsub.s32 %v330, %v332
    %v334 = vrot.slane %v320, %v333
    %v335 = vcombine.low %v327, %v334
    %v336 = vcombine.low %v151, %v160
    %v337 = vcombine.low %v169, %v178
    %v339 = vunpack.c.l.s4 1983009808
    %v340 = vunpack.c.0.s8 %v339
    %v341 = vlaneseq
    %v342 = vshrl.u32 %v341, 7
    %v343 = vsub.s32 %v340, %v342
    %v344 = vrot.slane %v336, %v343
    %v346 = vunpack.c.l.s4 1983009808
    %v347 = vunpack.c.0.s8 %v346
    %v348 = vlaneseq
    %v349 = vshrl.u32 %v348, 7
    %v350 = vsub.s32 %v347, %v349
    %v351 = vrot.slane %v337, %v350
    %v352 = vcombine.low %v344, %v351
    %vm353 = vcmask 130048
    %v354 = vsel %vm353, %v293, 0
    %v356 = vsel %vm353, %v310, 0
    %v358 = vsel %vm353, %v335, 0
    %v360 = vsel %vm353, %v352, 0
    %362 = vmatprep.subr.mxu0 0.0
    %363 = vmatpush1.xpose.msra.mxu0 0.0
    %364 = vmatprep.subr.mxu0 0.0
    %365 = vmatpush1.xpose.msra.mxu0 0.0
    %366 = vmatprep.subr.mxu0 0.0
    %367 = vmatpush1.xpose.msra.mxu0 0.0
    %368 = vmatprep.subr.mxu0 0.0
    %369 = vmatpush1.xpose.msra.mxu0 0.0
    %370 = vmatprep.subr.mxu0 0.0
    %371 = vmatpush1.xpose.msra.mxu0 0.0
    %372 = vmatprep.subr.mxu0 0.0
    %373 = vmatpush1.xpose.msra.mxu0 0.0
    %374 = vmatprep.subr.mxu0 0.0
    %375 = vmatpush1.xpose.msra.mxu0 0.0
    %376 = vmatprep.subr.mxu0 0.0
    %377 = vmatpush1.xpose.msra.mxu0 0.0
    %378 = vmatprep.subr.mxu0 0.0
    %379 = vmatpush1.xpose.msra.mxu0 0.0
    %380 = vmatprep.subr.mxu0 0.0
    %381 = vmatpush1.xpose.msra.mxu0 0.0
    %382 = vmatprep.subr.mxu0 0.0
    %383 = vmatpush1.xpose.msra.mxu0 0.0
    %384 = vmatprep.subr.mxu0 0.0
    %385 = vmatpush1.xpose.msra.mxu0 0.0
    %386 = vmatprep.subr.mxu0 0.0
    %387 = vmatpush1.xpose.msra.mxu0 0.0
    %388 = vmatprep.subr.mxu0 0.0
    %389 = vmatpush1.xpose.msra.mxu0 0.0
    %390 = vmatprep.subr.mxu0 0.0
    %391 = vmatpush1.xpose.msra.mxu0 %v360
    %392 = vmatprep.subr.mxu0 0.0
    %393 = vmatpush1.xpose.msra.mxu0 %v358
    %394 = vmatprep.subr.mxu0 0.0
    %395 = vmatpush2.xpose.msra.mxu0 0.0
    %396 = vmatprep.subr.mxu0 0.0
    %397 = vmatpush2.xpose.msra.mxu0 0.0
    %398 = vmatprep.subr.mxu0 0.0
    %399 = vmatpush2.xpose.msra.mxu0 0.0
    %400 = vmatprep.subr.mxu0 0.0
    %401 = vmatpush2.xpose.msra.mxu0 0.0
    %402 = vmatprep.subr.mxu0 0.0
    %403 = vmatpush2.xpose.msra.mxu0 0.0
    %404 = vmatprep.subr.mxu0 0.0
    %405 = vmatpush2.xpose.msra.mxu0 0.0
    %406 = vmatprep.subr.mxu0 0.0
    %407 = vmatpush2.xpose.msra.mxu0 0.0
    %408 = vmatprep.subr.mxu0 0.0
    %409 = vmatpush2.xpose.msra.mxu0 0.0
    %410 = vmatprep.subr.mxu0 0.0
    %411 = vmatpush2.xpose.msra.mxu0 0.0
    %412 = vmatprep.subr.mxu0 0.0
    %413 = vmatpush2.xpose.msra.mxu0 0.0
    %414 = vmatprep.subr.mxu0 0.0
    %415 = vmatpush2.xpose.msra.mxu0 0.0
    %416 = vmatprep.subr.mxu0 0.0
    %417 = vmatpush2.xpose.msra.mxu0 0.0
    %418 = vmatprep.subr.mxu0 0.0
    %419 = vmatpush2.xpose.msra.mxu0 0.0
    %420 = vmatprep.subr.mxu0 0.0
    %421 = vmatpush2.xpose.msra.mxu0 0.0
    %422 = vmatprep.subr.mxu0 0.0
    %423 = vmatpush2.xpose.msra.mxu0 0.0
    %424 = vmatprep.subr.mxu0 0.0
    %425 = vmatpush2.xpose.msra.mxu0 0.0
    %426 = vmatprep.mubr.f32.mxu0 0.0
    %427 = vmatmul.mubr.f32.gmra.mxu0 %v354
    %v428 = vpop.f32.mrf.mxu0
    %v429 = vadd.f32 0.0, %v428
    %v430 = vpop.f32.mrf.mxu0
    %431 = vmatprep.mubr.f32.mxu0 0.0
    %432 = vmatmul.mubr.f32.gmra.mxu0 %v356
    %v433 = vpop.f32.mrf.mxu0
    %v434 = vadd.f32 0.0, %v433
    %v435 = vpop.f32.mrf.mxu0
    %436 = vdwg.mxu0
    %v445 = vcombine.low %v261, %v262
    %v446 = vcombine.low %v263, %v264
    %v448 = vunpack.c.l.s4 1983009808
    %v449 = vunpack.c.0.s8 %v448
    %v450 = vlaneseq
    %v451 = vshrl.u32 %v450, 7
    %v452 = vsub.s32 %v449, %v451
    %v453 = vrot.slane %v445, %v452
    %v455 = vunpack.c.l.s4 1983009808
    %v456 = vunpack.c.0.s8 %v455
    %v457 = vlaneseq
    %v458 = vshrl.u32 %v457, 7
    %v459 = vsub.s32 %v456, %v458
    %v460 = vrot.slane %v446, %v459
    %v461 = vcombine.low %v453, %v460
    %v462 = vcombine.low %v265, %v266
    %v463 = vcombine.low %v267, %v268
    %v465 = vunpack.c.l.s4 1983009808
    %v466 = vunpack.c.0.s8 %v465
    %v467 = vlaneseq
    %v468 = vshrl.u32 %v467, 7
    %v469 = vsub.s32 %v466, %v468
    %v470 = vrot.slane %v462, %v469
    %v472 = vunpack.c.l.s4 1983009808
    %v473 = vunpack.c.0.s8 %v472
    %v474 = vlaneseq
    %v475 = vshrl.u32 %v474, 7
    %v476 = vsub.s32 %v473, %v475
    %v477 = vrot.slane %v463, %v476
    %v478 = vcombine.low %v470, %v477
    %v487 = vcombine.low %v116, %v125
    %v488 = vcombine.low %v134, %v143
    %v490 = vunpack.c.l.s4 1983009808
    %v491 = vunpack.c.0.s8 %v490
    %v492 = vlaneseq
    %v493 = vshrl.u32 %v492, 7
    %v494 = vsub.s32 %v491, %v493
    %v495 = vrot.slane %v487, %v494
    %v497 = vunpack.c.l.s4 1983009808
    %v498 = vunpack.c.0.s8 %v497
    %v499 = vlaneseq
    %v500 = vshrl.u32 %v499, 7
    %v501 = vsub.s32 %v498, %v500
    %v502 = vrot.slane %v488, %v501
    %v503 = vcombine.low %v495, %v502
    %v504 = vcombine.low %v152, %v161
    %v505 = vcombine.low %v170, %v179
    %v507 = vunpack.c.l.s4 1983009808
    %v508 = vunpack.c.0.s8 %v507
    %v509 = vlaneseq
    %v510 = vshrl.u32 %v509, 7
    %v511 = vsub.s32 %v508, %v510
    %v512 = vrot.slane %v504, %v511
    %v514 = vunpack.c.l.s4 1983009808
    %v515 = vunpack.c.0.s8 %v514
    %v516 = vlaneseq
    %v517 = vshrl.u32 %v516, 7
    %v518 = vsub.s32 %v515, %v517
    %v519 = vrot.slane %v505, %v518
    %v520 = vcombine.low %v512, %v519
    %v521 = vsel %vm353, %v461, 0
    %v523 = vsel %vm353, %v478, 0
    %v525 = vsel %vm353, %v503, 0
    %v527 = vsel %vm353, %v520, 0
    %529 = vmatprep.subr.mxu0 0.0
    %530 = vmatpush1.xpose.msra.mxu0 0.0
    %531 = vmatprep.subr.mxu0 0.0
    %532 = vmatpush1.xpose.msra.mxu0 0.0
    %533 = vmatprep.subr.mxu0 0.0
    %534 = vmatpush1.xpose.msra.mxu0 0.0
    %535 = vmatprep.subr.mxu0 0.0
    %536 = vmatpush1.xpose.msra.mxu0 0.0
    %537 = vmatprep.subr.mxu0 0.0
    %538 = vmatpush1.xpose.msra.mxu0 0.0
    %539 = vmatprep.subr.mxu0 0.0
    %540 = vmatpush1.xpose.msra.mxu0 0.0
    %541 = vmatprep.subr.mxu0 0.0
    %542 = vmatpush1.xpose.msra.mxu0 0.0
    %543 = vmatprep.subr.mxu0 0.0
    %544 = vmatpush1.xpose.msra.mxu0 0.0
    %545 = vmatprep.subr.mxu0 0.0
    %546 = vmatpush1.xpose.msra.mxu0 0.0
    %547 = vmatprep.subr.mxu0 0.0
    %548 = vmatpush1.xpose.msra.mxu0 0.0
    %549 = vmatprep.subr.mxu0 0.0
    %550 = vmatpush1.xpose.msra.mxu0 0.0
    %551 = vmatprep.subr.mxu0 0.0
    %552 = vmatpush1.xpose.msra.mxu0 0.0
    %553 = vmatprep.subr.mxu0 0.0
    %554 = vmatpush1.xpose.msra.mxu0 0.0
    %555 = vmatprep.subr.mxu0 0.0
    %556 = vmatpush1.xpose.msra.mxu0 0.0
    %557 = vmatprep.subr.mxu0 0.0
    %558 = vmatpush1.xpose.msra.mxu0 %v527
    %559 = vmatprep.subr.mxu0 0.0
    %560 = vmatpush1.xpose.msra.mxu0 %v525
    %561 = vmatprep.subr.mxu0 0.0
    %562 = vmatpush2.xpose.msra.mxu0 0.0
    %563 = vmatprep.subr.mxu0 0.0
    %564 = vmatpush2.xpose.msra.mxu0 0.0
    %565 = vmatprep.subr.mxu0 0.0
    %566 = vmatpush2.xpose.msra.mxu0 0.0
    %567 = vmatprep.subr.mxu0 0.0
    %568 = vmatpush2.xpose.msra.mxu0 0.0
    %569 = vmatprep.subr.mxu0 0.0
    %570 = vmatpush2.xpose.msra.mxu0 0.0
    %571 = vmatprep.subr.mxu0 0.0
    %572 = vmatpush2.xpose.msra.mxu0 0.0
    %573 = vmatprep.subr.mxu0 0.0
    %574 = vmatpush2.xpose.msra.mxu0 0.0
    %575 = vmatprep.subr.mxu0 0.0
    %576 = vmatpush2.xpose.msra.mxu0 0.0
    %577 = vmatprep.subr.mxu0 0.0
    %578 = vmatpush2.xpose.msra.mxu0 0.0
    %579 = vmatprep.subr.mxu0 0.0
    %580 = vmatpush2.xpose.msra.mxu0 0.0
    %581 = vmatprep.subr.mxu0 0.0
    %582 = vmatpush2.xpose.msra.mxu0 0.0
    %583 = vmatprep.subr.mxu0 0.0
    %584 = vmatpush2.xpose.msra.mxu0 0.0
    %585 = vmatprep.subr.mxu0 0.0
    %586 = vmatpush2.xpose.msra.mxu0 0.0
    %587 = vmatprep.subr.mxu0 0.0
    %588 = vmatpush2.xpose.msra.mxu0 0.0
    %589 = vmatprep.subr.mxu0 0.0
    %590 = vmatpush2.xpose.msra.mxu0 0.0
    %591 = vmatprep.subr.mxu0 0.0
    %592 = vmatpush2.xpose.msra.mxu0 0.0
    %593 = vmatprep.mubr.f32.mxu0 0.0
    %594 = vmatmul.mubr.f32.gmra.mxu0 %v521
    %v595 = vpop.f32.mrf.mxu0
    %v596 = vadd.f32 0.0, %v595
    %v597 = vpop.f32.mrf.mxu0
    %598 = vmatprep.mubr.f32.mxu0 0.0
    %599 = vmatmul.mubr.f32.gmra.mxu0 %v523
    %v600 = vpop.f32.mrf.mxu0
    %v601 = vadd.f32 0.0, %v600
    %v602 = vpop.f32.mrf.mxu0
    %603 = vdwg.mxu0
    %v604 = vcombine.high %v429, 0.0
    %v606 = vunpack.c.l.s4 1983009808
    %v607 = vunpack.c.0.s8 %v606
    %v608 = vlaneseq
    %v609 = vshrl.u32 %v608, 7
    %v610 = vsub.s32 %v607, %v609
    %v611 = vrot.slane %v429, %v610
    %v613 = vunpack.c.l.s4 1983009808
    %v614 = vunpack.c.0.s8 %v613
    %v615 = vlaneseq
    %v616 = vshrl.u32 %v615, 7
    %v617 = vsub.s32 %v614, %v616
    %v618 = vrot.slane %v604, %v617
    %v619 = vcombine.high %v596, 0.0
    %v621 = vunpack.c.l.s4 1983009808
    %v622 = vunpack.c.0.s8 %v621
    %v623 = vlaneseq
    %v624 = vshrl.u32 %v623, 7
    %v625 = vsub.s32 %v622, %v624
    %v626 = vrot.slane %v596, %v625
    %v628 = vunpack.c.l.s4 1983009808
    %v629 = vunpack.c.0.s8 %v628
    %v630 = vlaneseq
    %v631 = vshrl.u32 %v630, 7
    %v632 = vsub.s32 %v629, %v631
    %v633 = vrot.slane %v619, %v632
    %v634 = vcombine.low %v611, %v626
    %v635 = vcombine.high %v611, %v626
    %v637 = vunpack.c.l.s4 1934713408
    %v638 = vunpack.c.0.s8 %v637
    %v639 = vlaneseq
    %v640 = vshrl.u32 %v639, 7
    %v641 = vsub.s32 %v638, %v640
    %v642 = vrot.slane %v634, %v641
    %v644 = vunpack.c.l.s4 1934713408
    %v645 = vunpack.c.0.s8 %v644
    %v646 = vlaneseq
    %v647 = vshrl.u32 %v646, 7
    %v648 = vsub.s32 %v645, %v647
    %v649 = vrot.slane %v635, %v648
    %v650 = vcombine.low %v618, %v633
    %v651 = vcombine.high %v618, %v633
    %v653 = vunpack.c.l.s4 1934713408
    %v654 = vunpack.c.0.s8 %v653
    %v655 = vlaneseq
    %v656 = vshrl.u32 %v655, 7
    %v657 = vsub.s32 %v654, %v656
    %v658 = vrot.slane %v650, %v657
    %v660 = vunpack.c.l.s4 1934713408
    %v661 = vunpack.c.0.s8 %v660
    %v662 = vlaneseq
    %v663 = vshrl.u32 %v662, 7
    %v664 = vsub.s32 %v661, %v663
    %v665 = vrot.slane %v651, %v664
    %v666 = vcombine.high %v642, 0.0
    %v667 = vcombine.high %v649, 0.0
    %v668 = vcombine.high %v658, 0.0
    %v669 = vcombine.high %v665, 0.0
    %v670 = vcombine.high %v434, 0.0
    %v672 = vunpack.c.l.s4 1983009808
    %v673 = vunpack.c.0.s8 %v672
    %v674 = vlaneseq
    %v675 = vshrl.u32 %v674, 7
    %v676 = vsub.s32 %v673, %v675
    %v677 = vrot.slane %v434, %v676
    %v679 = vunpack.c.l.s4 1983009808
    %v680 = vunpack.c.0.s8 %v679
    %v681 = vlaneseq
    %v682 = vshrl.u32 %v681, 7
    %v683 = vsub.s32 %v680, %v682
    %v684 = vrot.slane %v670, %v683
    %v685 = vcombine.high %v601, 0.0
    %v687 = vunpack.c.l.s4 1983009808
    %v688 = vunpack.c.0.s8 %v687
    %v689 = vlaneseq
    %v690 = vshrl.u32 %v689, 7
    %v691 = vsub.s32 %v688, %v690
    %v692 = vrot.slane %v601, %v691
    %v694 = vunpack.c.l.s4 1983009808
    %v695 = vunpack.c.0.s8 %v694
    %v696 = vlaneseq
    %v697 = vshrl.u32 %v696, 7
    %v698 = vsub.s32 %v695, %v697
    %v699 = vrot.slane %v685, %v698
    %v700 = vcombine.low %v677, %v692
    %v701 = vcombine.high %v677, %v692
    %v703 = vunpack.c.l.s4 1934713408
    %v704 = vunpack.c.0.s8 %v703
    %v705 = vlaneseq
    %v706 = vshrl.u32 %v705, 7
    %v707 = vsub.s32 %v704, %v706
    %v708 = vrot.slane %v700, %v707
    %v710 = vunpack.c.l.s4 1934713408
    %v711 = vunpack.c.0.s8 %v710
    %v712 = vlaneseq
    %v713 = vshrl.u32 %v712, 7
    %v714 = vsub.s32 %v711, %v713
    %v715 = vrot.slane %v701, %v714
    %v716 = vcombine.low %v684, %v699
    %v717 = vcombine.high %v684, %v699
    %v719 = vunpack.c.l.s4 1934713408
    %v720 = vunpack.c.0.s8 %v719
    %v721 = vlaneseq
    %v722 = vshrl.u32 %v721, 7
    %v723 = vsub.s32 %v720, %v722
    %v724 = vrot.slane %v716, %v723
    %v726 = vunpack.c.l.s4 1934713408
    %v727 = vunpack.c.0.s8 %v726
    %v728 = vlaneseq
    %v729 = vshrl.u32 %v728, 7
    %v730 = vsub.s32 %v727, %v729
    %v731 = vrot.slane %v717, %v730
    %v732 = vcombine.high %v708, 0.0
    %v733 = vcombine.high %v715, 0.0
    %v734 = vcombine.high %v724, 0.0
    %v735 = vcombine.high %v731, 0.0
    %737 = vrot.lane.b32.xlu0 %v666, 16
    %v738 = vpop.permute.xlu0 %737
    %741 = vrot.lane.b32.xlu0 %v649, 32
    %v742 = vpop.permute.xlu0 %741
    %745 = vrot.lane.b32.xlu0 %v667, 48
    %v746 = vpop.permute.xlu0 %745
    %749 = vrot.lane.b32.xlu0 %v658, 64
    %v750 = vpop.permute.xlu0 %749
    %753 = vrot.lane.b32.xlu0 %v668, 80
    %v754 = vpop.permute.xlu0 %753
    %757 = vrot.lane.b32.xlu0 %v665, 96
    %v758 = vpop.permute.xlu0 %757
    %761 = vrot.lane.b32.xlu0 %v669, 112
    %v762 = vpop.permute.xlu0 %761
    %765 = vrot.lane.b32.xlu0 %v732, 16
    %v766 = vpop.permute.xlu0 %765
    %769 = vrot.lane.b32.xlu0 %v715, 32
    %v770 = vpop.permute.xlu0 %769
    %773 = vrot.lane.b32.xlu0 %v733, 48
    %v774 = vpop.permute.xlu0 %773
    %777 = vrot.lane.b32.xlu0 %v724, 64
    %v778 = vpop.permute.xlu0 %777
    %781 = vrot.lane.b32.xlu0 %v734, 80
    %v782 = vpop.permute.xlu0 %781
    %785 = vrot.lane.b32.xlu0 %v731, 96
    %v786 = vpop.permute.xlu0 %785
    %789 = vrot.lane.b32.xlu0 %v735, 112
    %v790 = vpop.permute.xlu0 %789
    %v792 = vsel %vm353, %v642, %v738
    %vm793 = vcmask 261120
    %v794 = vsel %vm793, %v792, %v742
    %vm795 = vcmask 392192
    %v796 = vsel %vm795, %v794, %v746
    %vm797 = vcmask 523264
    %v798 = vsel %vm797, %v796, %v750
    %vm799 = vcmask 654336
    %v800 = vsel %vm799, %v798, %v754
    %vm801 = vcmask 785408
    %v802 = vsel %vm801, %v800, %v758
    %vm803 = vcmask 916480
    %v804 = vsel %vm803, %v802, %v762
    %v805 = vsel %vm353, %v708, %v766
    %v806 = vsel %vm793, %v805, %v770
    %v807 = vsel %vm795, %v806, %v774
    %v808 = vsel %vm797, %v807, %v778
    %v809 = vsel %vm799, %v808, %v782
    %v810 = vsel %vm801, %v809, %v786
    %v811 = vsel %vm803, %v810, %v790
    %v814 = vcombine.low %v804, %v811
    %v816 = vunpack.c.l.s4 1983009808
    %v817 = vunpack.c.0.s8 %v816
    %v818 = vlaneseq
    %v819 = vshrl.u32 %v818, 7
    %v820 = vsub.s32 %v817, %v819
    %v821 = vrot.slane %v814, %v820
    %823 = vst [vmem:[#allocation9] sm:$0xf] %v821
    // Predicated region
    $region26: #{tpu_custom_call.1} parent=1 // pred_check
      _
    $region27: #{tpu_custom_call.1} parent=1 // pred_check_branch
      %825 = sbr.rel (0) target = $region29
    $region28: #{tpu_custom_call.1} parent=1 // pred_region
      %s827 = ssub.s32 64, 64
      %828 = vsyncadd [#allocation4], %s827
      %s830 = sshll.u32 [#allocation9], 4
      %s831 = int_to_ptr.vmem [resolvable:$true] %s830
      %833 = dma.vmem_to_hbm [thread:$0]  %s831, 64, %s3, [#allocation4]
    $region29: #{tpu_custom_call.1} parent=1 // pred_fallthru
      _
    // Predicated region
    $region30: #{tpu_custom_call.1} parent=1 // pred_check
      _
    $region31: #{tpu_custom_call.1} parent=1 // pred_check_branch
      %835 = sbr.rel (0) target = $region33
    $region32: #{tpu_custom_call.1} parent=1 // pred_region
      %836 = dma.done [#allocation4], 64
    $region33: #{tpu_custom_call.1} parent=1 // pred_fallthru
      _
    %837 = vsyncpa [#allocation3], 1
    %838 = vsyncpa [#allocation8], 1
    %839 = vsyncpa [#allocation4], 1
    %840 = vsyncpa [#allocation5], 1

// kernel: tpu_custom_call.1
$region0: #{tpu_custom_call.1}
  #allocation0 [shape = 'u32[]', space=smem, size = 0x4, offset = 0x4, fixed_abs, tag = 'smem constant byte address 0x4 - core index']
  #allocation1 [shape = 'u32[144,128]{1,0:T(1,128)}', space=vmem, size = 0x12000, scoped, tag = 'internal scratch']
  %s0 = inlined_call_operand.hbm [shape: f32[4], index: 0, kind: input, shape index: {}]
  %s1 = inlined_call_operand.hbm [shape: f32[2,16], index: 1, kind: input, shape index: {}]
  %s2 = inlined_call_operand.hbm [shape: f32[2,16,16], index: 2, kind: input, shape index: {}]
  %s3 = inlined_call_operand.hbm [shape: f32[2,16,16], index: 3, kind: output, shape index: {}]
  %s4 = sld [smem:[#allocation0]]
  $region34: #{tpu_custom_call.1} parent=0
    _
  %s6 = ssub.s32 1, %s4
  %s7 = scalar_select 0, %s6, %s4
  $region1: #{tpu_custom_call.1} parent=0
    #allocation2 [shape = 'u8[512]{0}', space=smem, size = 0x200, scoped, tag = 'input window, operand 0, single buffered']
    #allocation3 [shape = 's32[1]{0}', space=sflag, size = 0x4, scoped, tag = 'scoped memory for tpu_custom_call.1']
    #allocation4 [shape = 's32[1]{0}', space=sflag, size = 0x4, scoped, tag = 'scoped memory for tpu_custom_call.1']
    #allocation5 [shape = 's32[1]{0}', space=sflag, size = 0x4, scoped, tag = 'scoped memory for tpu_custom_call.1']
    #allocation6 [shape = 'u8[1024]{0}', space=vmem, size = 0x400, scoped, tag = 'input window, operand 1, single buffered']
    #allocation7 [shape = 'u8[16384]{0}', space=vmem, size = 0x4000, scoped, tag = 'input window, operand 2, single buffered']
    #allocation8 [shape = 's32[1]{0}', space=sflag, size = 0x4, scoped, tag = 'scoped memory for tpu_custom_call.1']
    #allocation9 [shape = 'u8[16384]{0}', space=vmem, size = 0x4000, scoped, tag = 'output window, operand 0, single buffered']
    %8 = vsyncpa [#allocation5], 0
    %9 = vsyncpa [#allocation3], 0
    %10 = vsyncpa [#allocation8], 0
    %11 = vsyncpa [#allocation4], 0
    // Predicated region
    $region2: #{tpu_custom_call.1} parent=1 // pred_check
      _
    $region3: #{tpu_custom_call.1} parent=1 // pred_check_branch
      %13 = sbr.rel (0) target = $region5
    $region4: #{tpu_custom_call.1} parent=1 // pred_region
      %s15 = ssub.s32 16, 16
      %16 = vsyncadd [#allocation5], %s15
      %19 = dma.hbm_to_smem %s0, 16, [#allocation2], [#allocation5]
    $region5: #{tpu_custom_call.1} parent=1 // pred_fallthru
      _
    // Predicated region
    $region6: #{tpu_custom_call.1} parent=1 // pred_check
      _
    $region7: #{tpu_custom_call.1} parent=1 // pred_check_branch
      %21 = sbr.rel (0) target = $region9
    $region8: #{tpu_custom_call.1} parent=1 // pred_region
      %s23 = ssub.s32 32, 32
      %24 = vsyncadd [#allocation3], %s23
      %s26 = sshll.u32 [#allocation6], 4
      %s27 = int_to_ptr.vmem [resolvable:$true] %s26
      %29 = dma.hbm_to_vmem [thread:$0]  %s1, 32, %s27, [#allocation3]
    $region9: #{tpu_custom_call.1} parent=1 // pred_fallthru
      _
    // Predicated region
    $region10: #{tpu_custom_call.1} parent=1 // pred_check
      _
    $region11: #{tpu_custom_call.1} parent=1 // pred_check_branch
      %31 = sbr.rel (0) target = $region13
    $region12: #{tpu_custom_call.1} parent=1 // pred_region
      %s33 = ssub.s32 512, 512
      %34 = vsyncadd [#allocation8], %s33
      %s35 = sshll.u32 [#allocation7], 4
      %s36 = int_to_ptr.vmem [resolvable:$true] %s35
      %41 = dma.hbm_to_vmem [thread:$0]  %s2, 512, %s36, [#allocation8], 128, 128, 8
    $region13: #{tpu_custom_call.1} parent=1 // pred_fallthru
      _
    // Predicated region
    $region14: #{tpu_custom_call.1} parent=1 // pred_check
      _
    $region15: #{tpu_custom_call.1} parent=1 // pred_check_branch
      %43 = sbr.rel (0) target = $region17
    $region16: #{tpu_custom_call.1} parent=1 // pred_region
      %44 = dma.done [#allocation5], 16
    $region17: #{tpu_custom_call.1} parent=1 // pred_fallthru
      _
    // Predicated region
    $region18: #{tpu_custom_call.1} parent=1 // pred_check
      _
    $region19: #{tpu_custom_call.1} parent=1 // pred_check_branch
      %46 = sbr.rel (0) target = $region21
    $region20: #{tpu_custom_call.1} parent=1 // pred_region
      %47 = dma.done [#allocation3], 32
    $region21: #{tpu_custom_call.1} parent=1 // pred_fallthru
      _
    // Predicated region
    $region22: #{tpu_custom_call.1} parent=1 // pred_check
      _
    $region23: #{tpu_custom_call.1} parent=1 // pred_check_branch
      %49 = sbr.rel (0) target = $region25
    $region24: #{tpu_custom_call.1} parent=1 // pred_region
      %50 = dma.done [#allocation8], 512
    $region25: #{tpu_custom_call.1} parent=1 // pred_fallthru
      _
    %51 = sfence
    %v52 = vld [vmem:[#allocation6] sm:$0x3]
    %v53 = vmax.f32 %v52, 0.0
    %vm54 = vcmp.le.f32.partialorder %v53, 0.0
    %vm55 = vcmp.gt.f32.partialorder %v53, 20.0
    %v56 = vmin.f32 %v53, 20.0
    %v57 = vmul.f32 %v56, 1.442695
    %v58 = vpow.pop %v57
    %v59 = vadd.f32 %v58, 1.0
    %v60 = vlog2.pop %v59
    %v61 = vmul.f32 %v60, 0.6931472
    %v62 = vmul.f32 -0.5, %v58
    %v63 = vadd.f32 %v62, 1.0
    %v64 = vmul.f32 %v63, %v58
    %v65 = vand.u32 2147483647, %v58
    %vm66 = vcmp.lt.f32.partialorder %v65, 0.0004427343
    %v67 = vsel %vm66, %v64, %v61
    %v68 = vsel %vm55, %v53, %v67
    %v69 = vadd.f32 %v68, 0.0001
    %v70 = vsel %vm54, %v69, %v53
    %v71 = vld [vmem:[#allocation7] sm:$0xff]
    %v72 = vld [vmem:[#allocation7 + $0x8] sm:$0xff]
    %v73 = vld [vmem:[#allocation7 + $0x10] sm:$0xff]
    %v74 = vld [vmem:[#allocation7 + $0x18] sm:$0xff]
    %v77 = vunpack.c.l.s4 1966171168
    %v78 = vunpack.c.0.s8 %v77
    %v79 = vlaneseq
    %v80 = vshrl.u32 %v79, 7
    %v81 = vsub.s32 %v78, %v80
    %v82 = vrot.slane %v70, %v81
    %v83 = vcombine.high %v82, %v82
    %v85 = vunpack.c.l.s4 1966171168
    %v86 = vunpack.c.0.s8 %v85
    %v87 = vlaneseq
    %v88 = vshrl.u32 %v87, 7
    %v89 = vsub.s32 %v86, %v88
    %v90 = vrot.slane %v82, %v89
    %v92 = vunpack.c.l.s4 1966171168
    %v93 = vunpack.c.0.s8 %v92
    %v94 = vlaneseq
    %v95 = vshrl.u32 %v94, 7
    %v96 = vsub.s32 %v93, %v95
    %v97 = vrot.slane %v83, %v96
    %v98 = vlaneseq
    %v99 = vshrl.u32 %v98, 7
    %v100 = vsub.s32 0, %v99
    %v101 = vrot.slane %v90, %v100
    %v102 = vlaneseq
    %v103 = vshrl.u32 %v102, 7
    %v104 = vsub.s32 0, %v103
    %v105 = vrot.slane %v97, %v104
    %v108 = vmul.f32 %v71, %v101
    %v109 = vmul.f32 %v72, %v101
    %v110 = vmul.f32 %v73, %v105
    %v111 = vmul.f32 %v74, %v105
    %vm112 = vcmask 130048
    %v114 = vsel %vm112, %v108, 0
    %v117 = vsel %vm112, %v109, 0
    %v120 = vsel %vm112, %v71, 0
    %v123 = vsel %vm112, %v72, 0
    %125 = vmatprep.subr.mxu0 0.0
    %126 = vmatpush1.xpose.msra.mxu0 0.0
    %127 = vmatprep.subr.mxu0 0.0
    %128 = vmatpush1.xpose.msra.mxu0 0.0
    %129 = vmatprep.subr.mxu0 0.0
    %130 = vmatpush1.xpose.msra.mxu0 0.0
    %131 = vmatprep.subr.mxu0 0.0
    %132 = vmatpush1.xpose.msra.mxu0 0.0
    %133 = vmatprep.subr.mxu0 0.0
    %134 = vmatpush1.xpose.msra.mxu0 0.0
    %135 = vmatprep.subr.mxu0 0.0
    %136 = vmatpush1.xpose.msra.mxu0 0.0
    %137 = vmatprep.subr.mxu0 0.0
    %138 = vmatpush1.xpose.msra.mxu0 0.0
    %139 = vmatprep.subr.mxu0 0.0
    %140 = vmatpush1.xpose.msra.mxu0 0.0
    %141 = vmatprep.subr.mxu0 0.0
    %142 = vmatpush1.xpose.msra.mxu0 0.0
    %143 = vmatprep.subr.mxu0 0.0
    %144 = vmatpush1.xpose.msra.mxu0 0.0
    %145 = vmatprep.subr.mxu0 0.0
    %146 = vmatpush1.xpose.msra.mxu0 0.0
    %147 = vmatprep.subr.mxu0 0.0
    %148 = vmatpush1.xpose.msra.mxu0 0.0
    %149 = vmatprep.subr.mxu0 0.0
    %150 = vmatpush1.xpose.msra.mxu0 0.0
    %151 = vmatprep.subr.mxu0 0.0
    %152 = vmatpush1.xpose.msra.mxu0 0.0
    %153 = vmatprep.subr.mxu0 0.0
    %154 = vmatpush1.xpose.msra.mxu0 %v123
    %155 = vmatprep.subr.mxu0 0.0
    %156 = vmatpush1.xpose.msra.mxu0 %v120
    %157 = vmatprep.subr.mxu0 0.0
    %158 = vmatpush2.xpose.msra.mxu0 0.0
    %159 = vmatprep.subr.mxu0 0.0
    %160 = vmatpush2.xpose.msra.mxu0 0.0
    %161 = vmatprep.subr.mxu0 0.0
    %162 = vmatpush2.xpose.msra.mxu0 0.0
    %163 = vmatprep.subr.mxu0 0.0
    %164 = vmatpush2.xpose.msra.mxu0 0.0
    %165 = vmatprep.subr.mxu0 0.0
    %166 = vmatpush2.xpose.msra.mxu0 0.0
    %167 = vmatprep.subr.mxu0 0.0
    %168 = vmatpush2.xpose.msra.mxu0 0.0
    %169 = vmatprep.subr.mxu0 0.0
    %170 = vmatpush2.xpose.msra.mxu0 0.0
    %171 = vmatprep.subr.mxu0 0.0
    %172 = vmatpush2.xpose.msra.mxu0 0.0
    %173 = vmatprep.subr.mxu0 0.0
    %174 = vmatpush2.xpose.msra.mxu0 0.0
    %175 = vmatprep.subr.mxu0 0.0
    %176 = vmatpush2.xpose.msra.mxu0 0.0
    %177 = vmatprep.subr.mxu0 0.0
    %178 = vmatpush2.xpose.msra.mxu0 0.0
    %179 = vmatprep.subr.mxu0 0.0
    %180 = vmatpush2.xpose.msra.mxu0 0.0
    %181 = vmatprep.subr.mxu0 0.0
    %182 = vmatpush2.xpose.msra.mxu0 0.0
    %183 = vmatprep.subr.mxu0 0.0
    %184 = vmatpush2.xpose.msra.mxu0 0.0
    %185 = vmatprep.subr.mxu0 0.0
    %186 = vmatpush2.xpose.msra.mxu0 0.0
    %187 = vmatprep.subr.mxu0 0.0
    %188 = vmatpush2.xpose.msra.mxu0 0.0
    %189 = vmatprep.mubr.f32.mxu0 0.0
    %190 = vmatmul.mubr.f32.gmra.mxu0 %v114
    %v191 = vpop.f32.mrf.mxu0
    %v192 = vadd.f32 0.0, %v191
    %v193 = vpop.f32.mrf.mxu0
    %194 = vmatprep.mubr.f32.mxu0 0.0
    %195 = vmatmul.mubr.f32.gmra.mxu0 %v117
    %v196 = vpop.f32.mrf.mxu0
    %v197 = vadd.f32 0.0, %v196
    %v198 = vpop.f32.mrf.mxu0
    %199 = vdwg.mxu0
    %v201 = vsel %vm112, %v110, 0
    %v204 = vsel %vm112, %v111, 0
    %v207 = vsel %vm112, %v73, 0
    %v210 = vsel %vm112, %v74, 0
    %212 = vmatprep.subr.mxu0 0.0
    %213 = vmatpush1.xpose.msra.mxu0 0.0
    %214 = vmatprep.subr.mxu0 0.0
    %215 = vmatpush1.xpose.msra.mxu0 0.0
    %216 = vmatprep.subr.mxu0 0.0
    %217 = vmatpush1.xpose.msra.mxu0 0.0
    %218 = vmatprep.subr.mxu0 0.0
    %219 = vmatpush1.xpose.msra.mxu0 0.0
    %220 = vmatprep.subr.mxu0 0.0
    %221 = vmatpush1.xpose.msra.mxu0 0.0
    %222 = vmatprep.subr.mxu0 0.0
    %223 = vmatpush1.xpose.msra.mxu0 0.0
    %224 = vmatprep.subr.mxu0 0.0
    %225 = vmatpush1.xpose.msra.mxu0 0.0
    %226 = vmatprep.subr.mxu0 0.0
    %227 = vmatpush1.xpose.msra.mxu0 0.0
    %228 = vmatprep.subr.mxu0 0.0
    %229 = vmatpush1.xpose.msra.mxu0 0.0
    %230 = vmatprep.subr.mxu0 0.0
    %231 = vmatpush1.xpose.msra.mxu0 0.0
    %232 = vmatprep.subr.mxu0 0.0
    %233 = vmatpush1.xpose.msra.mxu0 0.0
    %234 = vmatprep.subr.mxu0 0.0
    %235 = vmatpush1.xpose.msra.mxu0 0.0
    %236 = vmatprep.subr.mxu0 0.0
    %237 = vmatpush1.xpose.msra.mxu0 0.0
    %238 = vmatprep.subr.mxu0 0.0
    %239 = vmatpush1.xpose.msra.mxu0 0.0
    %240 = vmatprep.subr.mxu0 0.0
    %241 = vmatpush1.xpose.msra.mxu0 %v210
    %242 = vmatprep.subr.mxu0 0.0
    %243 = vmatpush1.xpose.msra.mxu0 %v207
    %244 = vmatprep.subr.mxu0 0.0
    %245 = vmatpush2.xpose.msra.mxu0 0.0
    %246 = vmatprep.subr.mxu0 0.0
    %247 = vmatpush2.xpose.msra.mxu0 0.0
    %248 = vmatprep.subr.mxu0 0.0
    %249 = vmatpush2.xpose.msra.mxu0 0.0
    %250 = vmatprep.subr.mxu0 0.0
    %251 = vmatpush2.xpose.msra.mxu0 0.0
    %252 = vmatprep.subr.mxu0 0.0
    %253 = vmatpush2.xpose.msra.mxu0 0.0
    %254 = vmatprep.subr.mxu0 0.0
    %255 = vmatpush2.xpose.msra.mxu0 0.0
    %256 = vmatprep.subr.mxu0 0.0
    %257 = vmatpush2.xpose.msra.mxu0 0.0
    %258 = vmatprep.subr.mxu0 0.0
    %259 = vmatpush2.xpose.msra.mxu0 0.0
    %260 = vmatprep.subr.mxu0 0.0
    %261 = vmatpush2.xpose.msra.mxu0 0.0
    %262 = vmatprep.subr.mxu0 0.0
    %263 = vmatpush2.xpose.msra.mxu0 0.0
    %264 = vmatprep.subr.mxu0 0.0
    %265 = vmatpush2.xpose.msra.mxu0 0.0
    %266 = vmatprep.subr.mxu0 0.0
    %267 = vmatpush2.xpose.msra.mxu0 0.0
    %268 = vmatprep.subr.mxu0 0.0
    %269 = vmatpush2.xpose.msra.mxu0 0.0
    %270 = vmatprep.subr.mxu0 0.0
    %271 = vmatpush2.xpose.msra.mxu0 0.0
    %272 = vmatprep.subr.mxu0 0.0
    %273 = vmatpush2.xpose.msra.mxu0 0.0
    %274 = vmatprep.subr.mxu0 0.0
    %275 = vmatpush2.xpose.msra.mxu0 0.0
    %276 = vmatprep.mubr.f32.mxu0 0.0
    %277 = vmatmul.mubr.f32.gmra.mxu0 %v201
    %v278 = vpop.f32.mrf.mxu0
    %v279 = vadd.f32 0.0, %v278
    %v280 = vpop.f32.mrf.mxu0
    %281 = vmatprep.mubr.f32.mxu0 0.0
    %282 = vmatmul.mubr.f32.gmra.mxu0 %v204
    %v283 = vpop.f32.mrf.mxu0
    %v284 = vadd.f32 0.0, %v283
    %v285 = vpop.f32.mrf.mxu0
    %286 = vdwg.mxu0
    %287 = vst.msk [vmem:[#allocation9] sm:$0xff] %vm112, %v192
    %288 = vst.msk [vmem:[#allocation9 + $0x8] sm:$0xff] %vm112, %v197
    %289 = vst.msk [vmem:[#allocation9 + $0x10] sm:$0xff] %vm112, %v279
    %290 = vst.msk [vmem:[#allocation9 + $0x18] sm:$0xff] %vm112, %v284
    // Predicated region
    $region26: #{tpu_custom_call.1} parent=1 // pred_check
      _
    $region27: #{tpu_custom_call.1} parent=1 // pred_check_branch
      %292 = sbr.rel (0) target = $region29
    $region28: #{tpu_custom_call.1} parent=1 // pred_region
      %s294 = ssub.s32 512, 512
      %295 = vsyncadd [#allocation4], %s294
      %s296 = sshll.u32 [#allocation9], 4
      %s297 = int_to_ptr.vmem [resolvable:$true] %s296
      %302 = dma.vmem_to_hbm [thread:$0]  %s297, 512, %s3, [#allocation4], 128, 128, 8
    $region29: #{tpu_custom_call.1} parent=1 // pred_fallthru
      _
    // Predicated region
    $region30: #{tpu_custom_call.1} parent=1 // pred_check
      _
    $region31: #{tpu_custom_call.1} parent=1 // pred_check_branch
      %304 = sbr.rel (0) target = $region33
    $region32: #{tpu_custom_call.1} parent=1 // pred_region
      %305 = dma.done [#allocation4], 512
    $region33: #{tpu_custom_call.1} parent=1 // pred_fallthru
      _
    %306 = vsyncpa [#allocation3], 1
    %307 = vsyncpa [#allocation8], 1
    %308 = vsyncpa [#allocation4], 1
    %309 = vsyncpa [#allocation5], 1

</llo_original>
